<compile_context>
chip_gen: v5e
topology: v5e:2x2
jax: 0.10.0
libtpu: 0.0.40
codegen_flags: <defaults>
</compile_context>

<pallas_src>
import functools

import jax
import jax.numpy as jnp
from jax.experimental import pallas as pl
from jax.experimental.pallas import tpu as pltpu

# ----- static model config (mirrors args / spaces in __init__) -----
OBS_DIM = 12          # obs_space.shape[0]
HIDDEN = 32           # args.hidden_size
LAYER_N = 2           # args.layer_N
ACT_DIM = 6           # Box action dim
USE_FEATURE_NORM = True
LN_EPS = 1e-5         # torch.nn.LayerNorm default

# bf16 weights -> native single-pass MXU matmuls on v5e/v6e/v7x.
# All LayerNorm / bias / tanh math stays in f32 (safe on v5e's f32-only VPU/EUP).
WEIGHT_DTYPE = jnp.bfloat16

BATCH = 16            # small demo batch
MAX_TILE_B = 2048     # batch-tile cap; ~5-8 MiB of VMEM -> fits v5e's 16 MiB
SMALL_B = 512         # below this, a single grid step is the overhead floor


def _round_up(n, m):
    return ((n + m - 1) // m) * m


def _choose_tile_b(B):
    """Pick the batch tile. Small B -> one step; large B -> >=2 steps so both
    v7x TensorCores are used via the 'parallel' grid axis."""
    if B <= SMALL_B:
        return _round_up(B, 8)
    return min(MAX_TILE_B, _round_up(pl.cdiv(B, 2), 8))


def _actor_kernel(layer_n, obs_ref, w1_ref, b1_ref, *rest):
    # rest layout: [w2_0, b2_0, ..., w2_{layer_n-1}, b2_{layer_n-1}, wo, bo, out]
    w2_refs = [rest[2 * i] for i in range(layer_n)]
    b2_refs = [rest[2 * i + 1] for i in range(layer_n)]
    wo_ref, bo_ref, out_ref = rest[2 * layer_n:]

    x = obs_ref[...].astype(jnp.float32)

    if USE_FEATURE_NORM:
        # One-pass statistics: mean and E[x^2] are independent reductions, so
        # both XLU reduces + the EUP rsqrt can overlap with the W1 MXU push.
        mean = jnp.mean(x, axis=-1, keepdims=True)
        mean_sq = jnp.mean(x * x, axis=-1, keepdims=True)
        var = mean_sq - mean * mean
        x = (x - mean) * jax.lax.rsqrt(var + LN_EPS)
        # LayerNorm affine (gamma/beta) is folded into w1/b1 in the wrapper.

    # layer1 + ReLU (activations cast to weight dtype -> native bf16 MXU path)
    h = jnp.dot(x.astype(w1_ref.dtype), w1_ref[...],
                preferred_element_type=jnp.float32) + b1_ref[...]
    h = jnp.maximum(h, 0.0)

    # layer2 clones: layer_N x (Linear(H, H) + ReLU), statically unrolled
    for w2_ref, b2_ref in zip(w2_refs, b2_refs):
        h = jnp.dot(h.astype(w2_ref.dtype), w2_ref[...],
                    preferred_element_type=jnp.float32) + b2_ref[...]
        h = jnp.maximum(h, 0.0)

    # ContinuousACTLayer, deterministic path: tanh(Linear(H, act_dim)).
    # Compact [tile_b, ACT_DIM] store (MXU-bound regime -> masked vst is cheap).
    # TODO(synk): exploration noise (noise_scale / noise_epsilon) is a runtime
    # sampling branch; only the deterministic action head is implemented.
    logits = jnp.dot(h.astype(wo_ref.dtype), wo_ref[...],
                     preferred_element_type=jnp.float32) + bo_ref[...]
    out_ref[...] = jnp.tanh(logits)


def _fold_layernorm_affine(params):
    """Fold LayerNorm affine into layer1: W1' = diag(g) @ W1, b1' = b @ W1 + b1."""
    w1_raw = params["w1"].astype(jnp.float32)
    b1 = params["b1"].astype(jnp.float32)
    if USE_FEATURE_NORM:
        g = params["ln_g"].astype(jnp.float32)          # (1, OBS_DIM)
        b = params["ln_b"].astype(jnp.float32)          # (1, OBS_DIM)
        b1 = b1 + b @ w1_raw                            # (1, HIDDEN)
        w1_raw = w1_raw * g.reshape(OBS_DIM, 1)         # diag(g) @ W1
    return w1_raw.astype(WEIGHT_DTYPE), b1


def maddpg_actor_forward(obs, params):
    """obs: [B, OBS_DIM] float32 -> actions: [B, ACT_DIM] float32."""
    B, D = obs.shape
    assert D == OBS_DIM

    # Fold LN affine into layer 1 once, at trace time.
    w1f, b1f = _fold_layernorm_affine(params)

    # Batch tiling: pad B up to a tile multiple (zero rows, sliced off later).
    tile_b = _choose_tile_b(B)
    b_pad = _round_up(B, tile_b)
    obs_p = obs if b_pad == B else jnp.pad(obs, ((0, b_pad - B), (0, 0)))
    grid = (b_pad // tile_b,)

    # Grid-invariant params: whole array resident in VMEM, no blocking /
    # per-step double-buffering.
    vmem = pl.BlockSpec(memory_space=pltpu.MemorySpace.VMEM)

    in_specs = [pl.BlockSpec((tile_b, OBS_DIM), lambda i: (i, 0)),  # obs tile
                vmem, vmem]                                          # w1', b1'
    args = [obs_p, w1f, b1f]
    for i in range(LAYER_N):
        in_specs += [vmem, vmem]                                     # w2_i, b2_i
        args += [params["w2"][i], params["b2"][i]]
    in_specs += [vmem, vmem]                                         # wo, bo
    args += [params["wo"], params["bo"]]

    kernel = functools.partial(_actor_kernel, LAYER_N)

    out = pl.pallas_call(
        kernel,
        out_shape=jax.ShapeDtypeStruct((b_pad, ACT_DIM), jnp.float32),
        grid=grid,
        in_specs=in_specs,
        out_specs=pl.BlockSpec((tile_b, ACT_DIM), lambda i: (i, 0)),
        compiler_params=pltpu.CompilerParams(
            dimension_semantics=("parallel",)),
    )(*args)

    return out if b_pad == B else out[:B]


def init_params(key):
    """Deterministic synthetic parameters (shapes follow the module __init__)."""
    ks = jax.random.split(key, 4 + LAYER_N)

    def xavier(k, fan_in, fan_out, shape):
        limit = (6.0 / (fan_in + fan_out)) ** 0.5
        return jax.random.uniform(k, shape, jnp.float32,
                                  -limit, limit).astype(WEIGHT_DTYPE)

    return {
        # LayerNorm affine (PyTorch default init is ones/zeros; perturb slightly
        # so the affine path is actually exercised)
        "ln_g": 1.0 + 0.01 * jax.random.normal(ks[0], (1, OBS_DIM), jnp.float32),
        "ln_b": 0.01 * jax.random.normal(ks[1], (1, OBS_DIM), jnp.float32),
        # layer1: Linear(obs_dim, hidden), stored pre-transposed as [in, out]
        "w1": xavier(ks[2], OBS_DIM, HIDDEN, (OBS_DIM, HIDDEN)),
        "b1": jnp.zeros((1, HIDDEN), jnp.float32),
        # layer2 clones: layer_N separate Linear(hidden, hidden)
        "w2": [xavier(ks[4 + i], HIDDEN, HIDDEN, (HIDDEN, HIDDEN))
               for i in range(LAYER_N)],
        "b2": [jnp.zeros((1, HIDDEN), jnp.float32) for _ in range(LAYER_N)],
        # action head: Linear(hidden, act_dim)
        "wo": xavier(ks[3], HIDDEN, ACT_DIM, (HIDDEN, ACT_DIM)),
        "bo": jnp.zeros((1, ACT_DIM), jnp.float32),
    }


def _reference_forward_f32(obs, p):
    """Pure-f32 reference mirroring the PyTorch module semantics."""
    x = obs
    if USE_FEATURE_NORM:
        mean = jnp.mean(x, axis=-1, keepdims=True)
        var = jnp.mean((x - mean) ** 2, axis=-1, keepdims=True)
        x = (x - mean) / jnp.sqrt(var + LN_EPS) * p["ln_g"] + p["ln_b"]
    h = jax.nn.relu(x @ p["w1"].astype(jnp.float32) + p["b1"])
    for i in range(LAYER_N):
        h = jax.nn.relu(h @ p["w2"][i].astype(jnp.float32) + p["b2"][i])
    return jnp.tanh(h @ p["wo"].astype(jnp.float32) + p["bo"])


def _reference_forward_mirrored(obs, p):
    """Reference mirroring the kernel's numeric pipeline (folded LN affine,
    one-pass stats, bf16 weight casts, f32 accumulation)."""
    w1f, b1f = _fold_layernorm_affine(p)
    x = obs
    if USE_FEATURE_NORM:
        mean = jnp.mean(x, axis=-1, keepdims=True)
        mean_sq = jnp.mean(x * x, axis=-1, keepdims=True)
        var = mean_sq - mean * mean
        x = (x - mean) * jax.lax.rsqrt(var + LN_EPS)
    h = jnp.maximum(jnp.dot(x.astype(w1f.dtype), w1f,
                            preferred_element_type=jnp.float32) + b1f, 0.0)
    for i in range(LAYER_N):
        w = p["w2"][i]
        h = jnp.maximum(jnp.dot(h.astype(w.dtype), w,
                                preferred_element_type=jnp.float32) + p["b2"][i], 0.0)
    wo = p["wo"]
    return jnp.tanh(jnp.dot(h.astype(wo.dtype), wo,
                            preferred_element_type=jnp.float32) + p["bo"])


if __name__ == "__main__":
    key = jax.random.PRNGKey(0)
    k_obs, k_par = jax.random.split(key)
    obs = jax.random.normal(k_obs, (BATCH, OBS_DIM), jnp.float32)
    params = init_params(k_par)

    actions = maddpg_actor_forward(obs, params)
    actions = jax.block_until_ready(actions)
    assert actions.shape == (BATCH, ACT_DIM)

    # Tight check vs. a reference that mirrors the kernel's exact numerics.
    ref_mirror = _reference_forward_mirrored(obs, params)
    assert jnp.allclose(actions, ref_mirror, atol=2e-3, rtol=2e-3), \
        "mismatch vs mirrored reference"

    # Loose (bf16-level) check vs. the pure-f32 PyTorch-semantic reference.
    ref_f32 = _reference_forward_f32(obs, params)
    assert jnp.allclose(actions, ref_f32, atol=3e-2, rtol=3e-2), \
        "mismatch vs f32 semantic reference"

    print("KERNEL_OK")
</pallas_src>

<mosaic_0001>
module attributes {stable_mosaic.version = 11 : i64} {
  func.func @_actor_kernel(%arg0: i32, %arg1: memref<16x12xf32, #tpu.memory_space<vmem>>, %arg2: memref<12x32xbf16, #tpu.memory_space<vmem>>, %arg3: memref<1x32xf32, #tpu.memory_space<vmem>>, %arg4: memref<32x32xbf16, #tpu.memory_space<vmem>>, %arg5: memref<1x32xf32, #tpu.memory_space<vmem>>, %arg6: memref<32x32xbf16, #tpu.memory_space<vmem>>, %arg7: memref<1x32xf32, #tpu.memory_space<vmem>>, %arg8: memref<32x6xbf16, #tpu.memory_space<vmem>>, %arg9: memref<1x6xf32, #tpu.memory_space<vmem>>, %arg10: memref<16x6xf32, #tpu.memory_space<vmem>>) attributes {dimension_semantics = [#tpu.dimension_semantics<parallel>], iteration_bounds = array<i64: 1>, scalar_prefetch = 0 : i64, scratch_operands = 0 : i64, tpu.core_type = #tpu.core_type<tc>, window_params = [{transform_indices = @transform_0, window_bounds = array<i64: 16, 12>}, {pipeline_mode = #tpu.pipeline_mode<synchronous>, transform_indices = @transform_1, window_bounds = array<i64: 12, 32>}, {pipeline_mode = #tpu.pipeline_mode<synchronous>, transform_indices = @transform_2, window_bounds = array<i64: 1, 32>}, {pipeline_mode = #tpu.pipeline_mode<synchronous>, transform_indices = @transform_3, window_bounds = array<i64: 32, 32>}, {pipeline_mode = #tpu.pipeline_mode<synchronous>, transform_indices = @transform_4, window_bounds = array<i64: 1, 32>}, {pipeline_mode = #tpu.pipeline_mode<synchronous>, transform_indices = @transform_5, window_bounds = array<i64: 32, 32>}, {pipeline_mode = #tpu.pipeline_mode<synchronous>, transform_indices = @transform_6, window_bounds = array<i64: 1, 32>}, {pipeline_mode = #tpu.pipeline_mode<synchronous>, transform_indices = @transform_7, window_bounds = array<i64: 32, 6>}, {pipeline_mode = #tpu.pipeline_mode<synchronous>, transform_indices = @transform_8, window_bounds = array<i64: 1, 6>}, {transform_indices = @transform_9, window_bounds = array<i64: 16, 6>}]} {
    %c0 = arith.constant 0 : index
    %c0_0 = arith.constant 0 : index
    %0 = vector.load %arg1[%c0, %c0_0] : memref<16x12xf32, #tpu.memory_space<vmem>>, vector<16x12xf32>
    %cst = arith.constant dense<0.000000e+00> : vector<16xf32>
    %1 = vector.multi_reduction <add>, %0, %cst [1] : vector<16x12xf32> to vector<16xf32>
    %2 = vector.shape_cast %1 : vector<16xf32> to vector<16x1xf32>
    %cst_1 = arith.constant 1.200000e+01 : f32
    %3 = vector.broadcast %cst_1 : f32 to vector<16x1xf32>
    %4 = arith.divf %2, %3 : vector<16x1xf32>
    %5 = arith.mulf %0, %0 : vector<16x12xf32>
    %cst_2 = arith.constant dense<0.000000e+00> : vector<16xf32>
    %6 = vector.multi_reduction <add>, %5, %cst_2 [1] : vector<16x12xf32> to vector<16xf32>
    %7 = vector.shape_cast %6 : vector<16xf32> to vector<16x1xf32>
    %cst_3 = arith.constant 1.200000e+01 : f32
    %8 = vector.broadcast %cst_3 : f32 to vector<16x1xf32>
    %9 = arith.divf %7, %8 : vector<16x1xf32>
    %10 = arith.mulf %4, %4 : vector<16x1xf32>
    %11 = arith.subf %9, %10 : vector<16x1xf32>
    %12 = vector.broadcast %4 : vector<16x1xf32> to vector<16x12xf32>
    %13 = arith.subf %0, %12 : vector<16x12xf32>
    %cst_4 = arith.constant 9.99999974E-6 : f32
    %14 = vector.broadcast %cst_4 : f32 to vector<16x1xf32>
    %15 = arith.addf %11, %14 : vector<16x1xf32>
    %16 = math.rsqrt %15 : vector<16x1xf32>
    %17 = vector.broadcast %16 : vector<16x1xf32> to vector<16x12xf32>
    %18 = arith.mulf %13, %17 : vector<16x12xf32>
    %19 = arith.truncf %18 : vector<16x12xf32> to vector<16x12xbf16>
    %c0_5 = arith.constant 0 : index
    %c0_6 = arith.constant 0 : index
    %20 = vector.load %arg2[%c0_5, %c0_6] : memref<12x32xbf16, #tpu.memory_space<vmem>>, vector<12x32xbf16>
    %cst_7 = arith.constant dense<0.000000e+00> : vector<16x32xf32>
    %21 = tpu.matmul %19, %20, %cst_7 {dimension_numbers = #tpu.dot_dimension_numbers<[1], [0], [0], [1], [0, 0, 1, 1], [], []>} : vector<16x12xbf16>, vector<12x32xbf16>, vector<16x32xf32> -> vector<16x32xf32>
    %c0_8 = arith.constant 0 : index
    %c0_9 = arith.constant 0 : index
    %22 = vector.load %arg3[%c0_8, %c0_9] : memref<1x32xf32, #tpu.memory_space<vmem>>, vector<1x32xf32>
    %23 = vector.broadcast %22 : vector<1x32xf32> to vector<16x32xf32>
    %24 = arith.addf %21, %23 : vector<16x32xf32>
    %cst_10 = arith.constant 0.000000e+00 : f32
    %25 = vector.broadcast %cst_10 : f32 to vector<16x32xf32>
    %26 = arith.maximumf %24, %25 : vector<16x32xf32>
    %27 = arith.truncf %26 : vector<16x32xf32> to vector<16x32xbf16>
    %c0_11 = arith.constant 0 : index
    %c0_12 = arith.constant 0 : index
    %28 = vector.load %arg4[%c0_11, %c0_12] : memref<32x32xbf16, #tpu.memory_space<vmem>>, vector<32x32xbf16>
    %cst_13 = arith.constant dense<0.000000e+00> : vector<16x32xf32>
    %29 = tpu.matmul %27, %28, %cst_13 {dimension_numbers = #tpu.dot_dimension_numbers<[1], [0], [0], [1], [0, 0, 1, 1], [], []>} : vector<16x32xbf16>, vector<32x32xbf16>, vector<16x32xf32> -> vector<16x32xf32>
    %c0_14 = arith.constant 0 : index
    %c0_15 = arith.constant 0 : index
    %30 = vector.load %arg5[%c0_14, %c0_15] : memref<1x32xf32, #tpu.memory_space<vmem>>, vector<1x32xf32>
    %31 = vector.broadcast %30 : vector<1x32xf32> to vector<16x32xf32>
    %32 = arith.addf %29, %31 : vector<16x32xf32>
    %cst_16 = arith.constant 0.000000e+00 : f32
    %33 = vector.broadcast %cst_16 : f32 to vector<16x32xf32>
    %34 = arith.maximumf %32, %33 : vector<16x32xf32>
    %35 = arith.truncf %34 : vector<16x32xf32> to vector<16x32xbf16>
    %c0_17 = arith.constant 0 : index
    %c0_18 = arith.constant 0 : index
    %36 = vector.load %arg6[%c0_17, %c0_18] : memref<32x32xbf16, #tpu.memory_space<vmem>>, vector<32x32xbf16>
    %cst_19 = arith.constant dense<0.000000e+00> : vector<16x32xf32>
    %37 = tpu.matmul %35, %36, %cst_19 {dimension_numbers = #tpu.dot_dimension_numbers<[1], [0], [0], [1], [0, 0, 1, 1], [], []>} : vector<16x32xbf16>, vector<32x32xbf16>, vector<16x32xf32> -> vector<16x32xf32>
    %c0_20 = arith.constant 0 : index
    %c0_21 = arith.constant 0 : index
    %38 = vector.load %arg7[%c0_20, %c0_21] : memref<1x32xf32, #tpu.memory_space<vmem>>, vector<1x32xf32>
    %39 = vector.broadcast %38 : vector<1x32xf32> to vector<16x32xf32>
    %40 = arith.addf %37, %39 : vector<16x32xf32>
    %cst_22 = arith.constant 0.000000e+00 : f32
    %41 = vector.broadcast %cst_22 : f32 to vector<16x32xf32>
    %42 = arith.maximumf %40, %41 : vector<16x32xf32>
    %43 = arith.truncf %42 : vector<16x32xf32> to vector<16x32xbf16>
    %c0_23 = arith.constant 0 : index
    %c0_24 = arith.constant 0 : index
    %44 = vector.load %arg8[%c0_23, %c0_24] : memref<32x6xbf16, #tpu.memory_space<vmem>>, vector<32x6xbf16>
    %cst_25 = arith.constant dense<0.000000e+00> : vector<16x6xf32>
    %45 = tpu.matmul %43, %44, %cst_25 {dimension_numbers = #tpu.dot_dimension_numbers<[1], [0], [0], [1], [0, 0, 1, 1], [], []>} : vector<16x32xbf16>, vector<32x6xbf16>, vector<16x6xf32> -> vector<16x6xf32>
    %c0_26 = arith.constant 0 : index
    %c0_27 = arith.constant 0 : index
    %46 = vector.load %arg9[%c0_26, %c0_27] : memref<1x6xf32, #tpu.memory_space<vmem>>, vector<1x6xf32>
    %47 = vector.broadcast %46 : vector<1x6xf32> to vector<16x6xf32>
    %48 = arith.addf %45, %47 : vector<16x6xf32>
    %49 = math.tanh %48 : vector<16x6xf32>
    %c0_28 = arith.constant 0 : index
    %c0_29 = arith.constant 0 : index
    %50 = vector.load %arg10[%c0_28, %c0_29] : memref<16x6xf32, #tpu.memory_space<vmem>>, vector<16x6xf32>
    tpu.vector_store %arg10[%c0_28, %c0_29], %49 {strides = array<i32>} : memref<16x6xf32, #tpu.memory_space<vmem>>, vector<16x6xf32>,
    return
  }
  func.func @transform_0(%arg0: i32) -> (i32, i32) {
    %c0_i32 = arith.constant 0 : i32
    %c0_i32_0 = arith.constant 0 : i32
    return %arg0, %c0_i32 : i32, i32
  }
  func.func @transform_1(%arg0: i32) -> (i32, i32) {
    %c0_i32 = arith.constant 0 : i32
    %c0_i32_0 = arith.constant 0 : i32
    %c0_i32_1 = arith.constant 0 : i32
    return %c0_i32, %c0_i32_0 : i32, i32
  }
  func.func @transform_2(%arg0: i32) -> (i32, i32) {
    %c0_i32 = arith.constant 0 : i32
    %c0_i32_0 = arith.constant 0 : i32
    %c0_i32_1 = arith.constant 0 : i32
    return %c0_i32, %c0_i32_0 : i32, i32
  }
  func.func @transform_3(%arg0: i32) -> (i32, i32) {
    %c0_i32 = arith.constant 0 : i32
    %c0_i32_0 = arith.constant 0 : i32
    %c0_i32_1 = arith.constant 0 : i32
    return %c0_i32, %c0_i32_0 : i32, i32
  }
  func.func @transform_4(%arg0: i32) -> (i32, i32) {
    %c0_i32 = arith.constant 0 : i32
    %c0_i32_0 = arith.constant 0 : i32
    %c0_i32_1 = arith.constant 0 : i32
    return %c0_i32, %c0_i32_0 : i32, i32
  }
  func.func @transform_5(%arg0: i32) -> (i32, i32) {
    %c0_i32 = arith.constant 0 : i32
    %c0_i32_0 = arith.constant 0 : i32
    %c0_i32_1 = arith.constant 0 : i32
    return %c0_i32, %c0_i32_0 : i32, i32
  }
  func.func @transform_6(%arg0: i32) -> (i32, i32) {
    %c0_i32 = arith.constant 0 : i32
    %c0_i32_0 = arith.constant 0 : i32
    %c0_i32_1 = arith.constant 0 : i32
    return %c0_i32, %c0_i32_0 : i32, i32
  }
  func.func @transform_7(%arg0: i32) -> (i32, i32) {
    %c0_i32 = arith.constant 0 : i32
    %c0_i32_0 = arith.constant 0 : i32
    %c0_i32_1 = arith.constant 0 : i32
    return %c0_i32, %c0_i32_0 : i32, i32
  }
  func.func @transform_8(%arg0: i32) -> (i32, i32) {
    %c0_i32 = arith.constant 0 : i32
    %c0_i32_0 = arith.constant 0 : i32
    %c0_i32_1 = arith.constant 0 : i32
    return %c0_i32, %c0_i32_0 : i32, i32
  }
  func.func @transform_9(%arg0: i32) -> (i32, i32) {
    %c0_i32 = arith.constant 0 : i32
    %c0_i32_0 = arith.constant 0 : i32
    return %arg0, %c0_i32 : i32, i32
  }
}

</mosaic_0001>

<llo_original>
// kernel: tpu_custom_call.1
$region0: #{tpu_custom_call.1}
  #allocation0 [shape = 'u32[]', space=smem, size = 0x4, offset = 0x4, fixed_abs, tag = 'smem constant byte address 0x4 - core index']
  #allocation1 [shape = 'u32[72,128]{1,0:T(1,128)}', space=vmem, size = 0x9000, scoped, tag = 'internal scratch']
  %s0 = inlined_call_operand.vmem [shape: f32[16,12], index: 0, kind: input, shape index: {}]
  %s1 = inlined_call_operand.hbm [shape: bf16[12,32], index: 1, kind: input, shape index: {}]
  %s2 = inlined_call_operand.vmem [shape: f32[1,32], index: 2, kind: input, shape index: {}]
  %s3 = inlined_call_operand.hbm [shape: bf16[32,32], index: 3, kind: input, shape index: {}]
  %s4 = inlined_call_operand.vmem [shape: f32[1,32], index: 4, kind: input, shape index: {}]
  %s5 = inlined_call_operand.hbm [shape: bf16[32,32], index: 5, kind: input, shape index: {}]
  %s6 = inlined_call_operand.vmem [shape: f32[1,32], index: 6, kind: input, shape index: {}]
  %s7 = inlined_call_operand.vmem [shape: bf16[32,6], index: 7, kind: input, shape index: {}]
  %s8 = inlined_call_operand.vmem [shape: f32[1,6], index: 8, kind: input, shape index: {}]
  %s9 = inlined_call_operand.vmem [shape: f32[16,6], index: 9, kind: output, shape index: {}]
  %s10 = sld [smem:[#allocation0]]
  $region58: #{tpu_custom_call.1} parent=0
    _
  %s12 = ssub.s32 1, %s10
  %s13 = scalar_select 0, %s12, %s10
  $region1: #{tpu_custom_call.1} parent=0
    #allocation2 [shape = 'u8[4096]{0}', space=vmem, size = 0x1000, scoped, tag = 'input window, operand 1, single buffered']
    #allocation3 [shape = 's32[1]{0}', space=sflag, size = 0x4, scoped, tag = 'scoped memory for tpu_custom_call.1']
    #allocation4 [shape = 'u8[8192]{0}', space=vmem, size = 0x2000, scoped, tag = 'input window, operand 3, single buffered']
    #allocation5 [shape = 's32[1]{0}', space=sflag, size = 0x4, scoped, tag = 'scoped memory for tpu_custom_call.1']
    #allocation6 [shape = 'u8[8192]{0}', space=vmem, size = 0x2000, scoped, tag = 'input window, operand 5, single buffered']
    %14 = vsyncpa [#allocation3], 0
    %15 = vsyncpa [#allocation5], 0
    // Predicated region
    $region2: #{tpu_custom_call.1} parent=1 // pred_check
      _
    $region3: #{tpu_custom_call.1} parent=1 // pred_check_branch
      %17 = sbr.rel (0) target = $region5
    $region4: #{tpu_custom_call.1} parent=1 // pred_region
      _
    $region5: #{tpu_custom_call.1} parent=1 // pred_fallthru
      _
    // Predicated region
    $region6: #{tpu_custom_call.1} parent=1 // pred_check
      _
    $region7: #{tpu_custom_call.1} parent=1 // pred_check_branch
      %19 = sbr.rel (0) target = $region9
    $region8: #{tpu_custom_call.1} parent=1 // pred_region
      %21 = vsyncadd [#allocation3], 0
      %s22 = sshll.u32 %s1, 4
      %s23 = int_to_ptr.hbm [resolvable:$true] %s22
      %s24 = sshll.u32 [#allocation2], 4
      %s25 = int_to_ptr.vmem [resolvable:$true] %s24
      %30 = dma.hbm_to_vmem [thread:$0]  %s23, 128, %s25, [#allocation3], 64, 64, 4
    $region9: #{tpu_custom_call.1} parent=1 // pred_fallthru
      _
    // Predicated region
    $region10: #{tpu_custom_call.1} parent=1 // pred_check
      _
    $region11: #{tpu_custom_call.1} parent=1 // pred_check_branch
      %32 = sbr.rel (0) target = $region13
    $region12: #{tpu_custom_call.1} parent=1 // pred_region
      _
    $region13: #{tpu_custom_call.1} parent=1 // pred_fallthru
      _
    // Predicated region
    $region14: #{tpu_custom_call.1} parent=1 // pred_check
      _
    $region15: #{tpu_custom_call.1} parent=1 // pred_check_branch
      %34 = sbr.rel (0) target = $region17
    $region16: #{tpu_custom_call.1} parent=1 // pred_region
      %36 = vsyncadd [#allocation5], 0
      %s37 = sshll.u32 %s3, 4
      %s38 = int_to_ptr.hbm [resolvable:$true] %s37
      %s39 = sshll.u32 [#allocation4], 4
      %s40 = int_to_ptr.vmem [resolvable:$true] %s39
      %45 = dma.hbm_to_vmem [thread:$0]  %s38, 256, %s40, [#allocation5], 64, 64, 4
    $region17: #{tpu_custom_call.1} parent=1 // pred_fallthru
      _
    // Predicated region
    $region18: #{tpu_custom_call.1} parent=1 // pred_check
      _
    $region19: #{tpu_custom_call.1} parent=1 // pred_check_branch
      %47 = sbr.rel (0) target = $region21
    $region20: #{tpu_custom_call.1} parent=1 // pred_region
      _
    $region21: #{tpu_custom_call.1} parent=1 // pred_fallthru
      _
    // Predicated region
    $region22: #{tpu_custom_call.1} parent=1 // pred_check
      _
    $region23: #{tpu_custom_call.1} parent=1 // pred_check_branch
      %49 = sbr.rel (0) target = $region25
    $region24: #{tpu_custom_call.1} parent=1 // pred_region
      %51 = vsyncadd [#allocation5], 0
      %s52 = sshll.u32 %s5, 4
      %s53 = int_to_ptr.hbm [resolvable:$true] %s52
      %s54 = sshll.u32 [#allocation6], 4
      %s55 = int_to_ptr.vmem [resolvable:$true] %s54
      %60 = dma.hbm_to_vmem [thread:$0]  %s53, 256, %s55, [#allocation5], 64, 64, 4
    $region25: #{tpu_custom_call.1} parent=1 // pred_fallthru
      _
    // Predicated region
    $region26: #{tpu_custom_call.1} parent=1 // pred_check
      _
    $region27: #{tpu_custom_call.1} parent=1 // pred_check_branch
      %62 = sbr.rel (0) target = $region29
    $region28: #{tpu_custom_call.1} parent=1 // pred_region
      _
    $region29: #{tpu_custom_call.1} parent=1 // pred_fallthru
      _
    // Predicated region
    $region30: #{tpu_custom_call.1} parent=1 // pred_check
      _
    $region31: #{tpu_custom_call.1} parent=1 // pred_check_branch
      %64 = sbr.rel (0) target = $region33
    $region32: #{tpu_custom_call.1} parent=1 // pred_region
      _
    $region33: #{tpu_custom_call.1} parent=1 // pred_fallthru
      _
    // Predicated region
    $region34: #{tpu_custom_call.1} parent=1 // pred_check
      _
    $region35: #{tpu_custom_call.1} parent=1 // pred_check_branch
      %66 = sbr.rel (0) target = $region37
    $region36: #{tpu_custom_call.1} parent=1 // pred_region
      _
    $region37: #{tpu_custom_call.1} parent=1 // pred_fallthru
      _
    // Predicated region
    $region38: #{tpu_custom_call.1} parent=1 // pred_check
      _
    $region39: #{tpu_custom_call.1} parent=1 // pred_check_branch
      %68 = sbr.rel (0) target = $region41
    $region40: #{tpu_custom_call.1} parent=1 // pred_region
      %70 = dma.done [#allocation3], 128
    $region41: #{tpu_custom_call.1} parent=1 // pred_fallthru
      _
    // Predicated region
    $region42: #{tpu_custom_call.1} parent=1 // pred_check
      _
    $region43: #{tpu_custom_call.1} parent=1 // pred_check_branch
      %72 = sbr.rel (0) target = $region45
    $region44: #{tpu_custom_call.1} parent=1 // pred_region
      %74 = dma.done [#allocation5], 256
    $region45: #{tpu_custom_call.1} parent=1 // pred_fallthru
      _
    // Predicated region
    $region46: #{tpu_custom_call.1} parent=1 // pred_check
      _
    $region47: #{tpu_custom_call.1} parent=1 // pred_check_branch
      %76 = sbr.rel (0) target = $region49
    $region48: #{tpu_custom_call.1} parent=1 // pred_region
      %78 = dma.done [#allocation5], 256
    $region49: #{tpu_custom_call.1} parent=1 // pred_fallthru
      _
    %v80 = vld [vmem:[%s0] sm:$0xff]
    %v81 = vld [vmem:[%s0 + $0x8] sm:$0xff]
    %vm82 = vcmask 97280
    %v83 = vsel %vm82, %v80, 0.0
    %84 = vadd.xlane.f32.xlu0 %v83
    %v85 = vpop.xlane.xlu0 %84
    %v86 = vsel %vm82, %v81, 0.0
    %87 = vadd.xlane.f32.xlu0 %v86
    %v88 = vpop.xlane.xlu0 %87
    %v89 = vrcp.pop 12.0
    %v90 = vmul.f32 12.0, %v89
    %v91 = vsub.f32 1.0, %v90
    %v92 = vmul.f32 %v89, %v91
    %v93 = vadd.f32 %v89, %v92
    %vm94 = vweird.f32 %v89
    %v95 = vsel %vm94, %v89, %v93
    %v96 = vmul.f32 %v85, %v95
    %v97 = vmul.f32 %v88, %v95
    %v98 = vmul.f32 %v80, %v80
    %v99 = vmul.f32 %v81, %v81
    %v100 = vsel %vm82, %v98, 0.0
    %101 = vadd.xlane.f32.xlu0 %v100
    %v102 = vpop.xlane.xlu0 %101
    %v103 = vsel %vm82, %v99, 0.0
    %104 = vadd.xlane.f32.xlu0 %v103
    %v105 = vpop.xlane.xlu0 %104
    %v106 = vmul.f32 %v102, %v95
    %v107 = vmul.f32 %v105, %v95
    %v108 = vmul.f32 %v96, %v96
    %v109 = vmul.f32 %v97, %v97
    %v110 = vsub.f32 %v106, %v108
    %v111 = vsub.f32 %v107, %v109
    %v112 = vsub.f32 %v80, %v96
    %v113 = vsub.f32 %v81, %v97
    %v114 = vadd.f32 %v110, 1e-05
    %v115 = vadd.f32 %v111, 1e-05
    %v116 = vrsqrt.pop %v114
    %v117 = vmul.f32 %v116, %v114
    %v118 = vmul.f32 %v117, %v116
    %v119 = vmul.f32 0.5, %v118
    %v120 = vsub.f32 1.5, %v119
    %v121 = vmul.f32 %v116, %v120
    %vm122 = vweird.f32 %v114
    %vm123 = vweird.f32 %v116
    %vm124 = vmor %vm122, %vm123
    %v125 = vsel %vm124, %v116, %v121
    %v126 = vrsqrt.pop %v115
    %v127 = vmul.f32 %v126, %v115
    %v128 = vmul.f32 %v127, %v126
    %v129 = vmul.f32 0.5, %v128
    %v130 = vsub.f32 1.5, %v129
    %v131 = vmul.f32 %v126, %v130
    %vm132 = vweird.f32 %v115
    %vm133 = vweird.f32 %v126
    %vm134 = vmor %vm132, %vm133
    %v135 = vsel %vm134, %v126, %v131
    %v136 = vmul.f32 %v112, %v125
    %v137 = vmul.f32 %v113, %v135
    %v138 = vpack.c.bf16 %v137, %v136
    %v139 = vld [vmem:[#allocation2] sm:$0xf]
    %v140 = vld [vmem:[#allocation2 + $0x4] sm:$0x3]
    %v141 = vld [vmem:[%s2] sm:$0x1]
    %v143 = vperm.slane %v141, 0
    %v147 = vunpack.c.l.b16 %v139
    %v148 = vunpack.c.l.b16 %v140
    %v149 = vpack.c.b16 %v148, %v147
    %v151 = vsel %vm82, %v138, 0
    %vm153 = vcmask 1045504
    %v155 = vsel %vm153, %v149, 0
    %157 = vmatpush.bf16.msra.mxu0 0
    %158 = vmatpush.bf16.msra.mxu0 0
    %159 = vmatpush.bf16.msra.mxu0 0
    %160 = vmatpush.bf16.msra.mxu0 0
    %161 = vmatpush.bf16.msra.mxu0 0
    %162 = vmatpush.bf16.msra.mxu0 0
    %163 = vmatpush.bf16.msra.mxu0 0
    %164 = vmatpush.bf16.msra.mxu0 %v155
    %165 = vmatmul.bf16.gmra.mxu0 %v151
    %v166 = vpop.f32.mrf.mxu0
    %v167 = vadd.f32 %v143, %v166
    %v168 = vpop.f32.mrf.mxu0
    %v169 = vadd.f32 %v143, %v168
    %170 = vdwg.mxu0
    %v171 = vmax.f32 %v167, 0.0
    %v172 = vmax.f32 %v169, 0.0
    %v173 = vpack.c.bf16 %v172, %v171
    %v174 = vld [vmem:[#allocation4] sm:$0xf]
    %v175 = vld [vmem:[#allocation4 + $0x4] sm:$0xf]
    %v176 = vld [vmem:[#allocation4 + $0x8] sm:$0xf]
    %v177 = vld [vmem:[#allocation4 + $0xc] sm:$0xf]
    %v178 = vld [vmem:[%s4] sm:$0x1]
    %v180 = vperm.slane %v178, 0
    %v186 = vunpack.c.l.b16 %v174
    %v187 = vunpack.c.l.b16 %v175
    %v188 = vunpack.c.l.b16 %v176
    %v189 = vunpack.c.l.b16 %v177
    %v190 = vpack.c.b16 %v187, %v186
    %v191 = vpack.c.b16 %v189, %v188
    %vm194 = vcmask 261120
    %v196 = vsel %vm194, %v173, 0
    %198 = vmatpush.bf16.msra.mxu0 0
    %199 = vmatpush.bf16.msra.mxu0 0
    %200 = vmatpush.bf16.msra.mxu0 0
    %201 = vmatpush.bf16.msra.mxu0 0
    %202 = vmatpush.bf16.msra.mxu0 0
    %203 = vmatpush.bf16.msra.mxu0 0
    %204 = vmatpush.bf16.msra.mxu0 %v191
    %205 = vmatpush.bf16.msra.mxu0 %v190
    %206 = vmatmul.bf16.gmra.mxu0 %v196
    %v207 = vpop.f32.mrf.mxu0
    %v208 = vadd.f32 %v180, %v207
    %v209 = vpop.f32.mrf.mxu0
    %v210 = vadd.f32 %v180, %v209
    %211 = vdwg.mxu0
    %v212 = vmax.f32 %v208, 0.0
    %v213 = vmax.f32 %v210, 0.0
    %v214 = vpack.c.bf16 %v213, %v212
    %v215 = vld [vmem:[#allocation6] sm:$0xf]
    %v216 = vld [vmem:[#allocation6 + $0x4] sm:$0xf]
    %v217 = vld [vmem:[#allocation6 + $0x8] sm:$0xf]
    %v218 = vld [vmem:[#allocation6 + $0xc] sm:$0xf]
    %v219 = vld [vmem:[%s6] sm:$0x1]
    %v221 = vperm.slane %v219, 0
    %v227 = vunpack.c.l.b16 %v215
    %v228 = vunpack.c.l.b16 %v216
    %v229 = vunpack.c.l.b16 %v217
    %v230 = vunpack.c.l.b16 %v218
    %v231 = vpack.c.b16 %v228, %v227
    %v232 = vpack.c.b16 %v230, %v229
    %v236 = vsel %vm194, %v214, 0
    %238 = vmatpush.bf16.msra.mxu0 0
    %239 = vmatpush.bf16.msra.mxu0 0
    %240 = vmatpush.bf16.msra.mxu0 0
    %241 = vmatpush.bf16.msra.mxu0 0
    %242 = vmatpush.bf16.msra.mxu0 0
    %243 = vmatpush.bf16.msra.mxu0 0
    %244 = vmatpush.bf16.msra.mxu0 %v232
    %245 = vmatpush.bf16.msra.mxu0 %v231
    %246 = vmatmul.bf16.gmra.mxu0 %v236
    %v247 = vpop.f32.mrf.mxu0
    %v248 = vadd.f32 %v221, %v247
    %v249 = vpop.f32.mrf.mxu0
    %v250 = vadd.f32 %v221, %v249
    %251 = vdwg.mxu0
    %v252 = vmax.f32 %v248, 0.0
    %v253 = vmax.f32 %v250, 0.0
    %v254 = vpack.c.bf16 %v253, %v252
    %v255 = vld [vmem:[%s7] sm:$0xf]
    %v256 = vld [vmem:[%s7 + $0x4] sm:$0xf]
    %v257 = vld [vmem:[%s7 + $0x8] sm:$0xf]
    %v258 = vld [vmem:[%s7 + $0xc] sm:$0xf]
    %v259 = vld [vmem:[%s8] sm:$0x1]
    %v261 = vperm.slane %v259, 0
    %v267 = vunpack.c.l.b16 %v255
    %v268 = vunpack.c.l.b16 %v256
    %v269 = vunpack.c.l.b16 %v257
    %v270 = vunpack.c.l.b16 %v258
    %v271 = vpack.c.b16 %v268, %v267
    %v272 = vpack.c.b16 %v270, %v269
    %v276 = vsel %vm194, %v254, 0
    %278 = vmatpush.bf16.msra.mxu0 0
    %279 = vmatpush.bf16.msra.mxu0 0
    %280 = vmatpush.bf16.msra.mxu0 0
    %281 = vmatpush.bf16.msra.mxu0 0
    %282 = vmatpush.bf16.msra.mxu0 0
    %283 = vmatpush.bf16.msra.mxu0 0
    %284 = vmatpush.bf16.msra.mxu0 %v272
    %285 = vmatpush.bf16.msra.mxu0 %v271
    %286 = vmatmul.bf16.gmra.mxu0 %v276
    %v287 = vpop.f32.mrf.mxu0
    %v288 = vadd.f32 %v261, %v287
    %v289 = vpop.f32.mrf.mxu0
    %v290 = vadd.f32 %v261, %v289
    %291 = vdwg.mxu0
    %v292 = vtanh.pop %v288
    %v293 = vtanh.pop %v290
    %vm294 = vcmask 48128
    %295 = vst.msk [vmem:[%s9] sm:$0xff] %vm294, %v292
    %296 = vst.msk [vmem:[%s9 + $0x8] sm:$0xff] %vm294, %v293
    // Predicated region
    $region50: #{tpu_custom_call.1} parent=1 // pred_check
      _
    $region51: #{tpu_custom_call.1} parent=1 // pred_check_branch
      %298 = sbr.rel (0) target = $region53
    $region52: #{tpu_custom_call.1} parent=1 // pred_region
      _
    $region53: #{tpu_custom_call.1} parent=1 // pred_fallthru
      _
    // Predicated region
    $region54: #{tpu_custom_call.1} parent=1 // pred_check
      _
    $region55: #{tpu_custom_call.1} parent=1 // pred_check_branch
      %300 = sbr.rel (0) target = $region57
    $region56: #{tpu_custom_call.1} parent=1 // pred_region
      _
    $region57: #{tpu_custom_call.1} parent=1 // pred_fallthru
      _
    %301 = vsyncpa [#allocation3], 1
    %302 = vsyncpa [#allocation5], 1

</llo_original>
